<compile_context>
chip_gen: v6e
topology: v6e:2x2x1
jax: 0.10.0
libtpu: 0.0.40
codegen_flags: <defaults>
</compile_context>

<pallas_src>
import functools

import jax
import jax.numpy as jnp
from jax import lax
from jax.experimental import pallas as pl
from jax.experimental.pallas import tpu as pltpu

BN_EPS = 1e-5
LANE = 128


def _round_up(x, m):
    return (x + m - 1) // m * m


# -----------------------------------------------------------------------------
# Kernel: 3 matmuls + bias + ReLU (BN already folded into W/b, dropout = id).
# -----------------------------------------------------------------------------
def moa_kernel(x_ref, w1_ref, b1_ref, w2_ref, b2_ref, w3_ref, b3_ref, o_ref):
    # x tile: [TB, in_p] bf16; weights bf16; biases f32; accumulate in f32.
    h = jnp.dot(x_ref[...], w1_ref[...], preferred_element_type=jnp.float32)
    h = jnp.maximum(h + b1_ref[...], 0.0)

    h = jnp.dot(h.astype(jnp.bfloat16), w2_ref[...],
                preferred_element_type=jnp.float32)
    h = jnp.maximum(h + b2_ref[...], 0.0)

    o = jnp.dot(h.astype(jnp.bfloat16), w3_ref[...],
                preferred_element_type=jnp.float32)
    o_ref[...] = (o + b3_ref[...]).astype(o_ref.dtype)


# -----------------------------------------------------------------------------
# Parameter prep: fold BN into Linear, pad to lane multiples, cast to bf16.
# -----------------------------------------------------------------------------
def fold_and_pad_params(p):
    """Fold eval-mode BatchNorms into the Linear weights/biases and pad.

    BN(x) = x * s + c   with  s = gamma * rsqrt(var + eps),  c = beta - mean*s.
      layer1: BN1(BN0(x) @ W1 + b1) = x @ (s0^T * W1 * s1) + ((c0@W1 + b1)*s1 + c1)
      layer2: BN2(h @ W2 + b2)      = h @ (W2 * s2)         + (b2*s2 + c2)
    """
    s0 = p["bn0_g"] * lax.rsqrt(p["bn0_v"] + BN_EPS)
    c0 = p["bn0_b"] - p["bn0_m"] * s0
    s1 = p["bn1_g"] * lax.rsqrt(p["bn1_v"] + BN_EPS)
    c1 = p["bn1_b"] - p["bn1_m"] * s1
    s2 = p["bn2_g"] * lax.rsqrt(p["bn2_v"] + BN_EPS)
    c2 = p["bn2_b"] - p["bn2_m"] * s2

    w1f = (s0.T * p["w1"]) * s1                       # [in, hid]
    b1f = (c0 @ p["w1"] + p["b1"]) * s1 + c1          # [1, hid]
    w2f = p["w2"] * s2                                # [hid, hid]
    b2f = p["b2"] * s2 + c2                           # [1, hid]
    w3f = p["w3"]                                     # [hid, out]
    b3f = p["b3"]                                     # [1, out]

    num_in, num_hidden = w1f.shape
    num_out = w3f.shape[1]
    in_p = _round_up(num_in, LANE)
    hid_p = _round_up(num_hidden, LANE)
    out_p = _round_up(num_out, LANE)

    def pad2(a, rows, cols):
        return jnp.pad(a, ((0, rows - a.shape[0]), (0, cols - a.shape[1])))

    # Padded rows/columns are zero, so padded lanes never leak into real outputs.
    return dict(
        w1=pad2(w1f, in_p, hid_p).astype(jnp.bfloat16),
        b1=pad2(b1f, 1, hid_p).astype(jnp.float32),
        w2=pad2(w2f, hid_p, hid_p).astype(jnp.bfloat16),
        b2=pad2(b2f, 1, hid_p).astype(jnp.float32),
        w3=pad2(w3f, hid_p, out_p).astype(jnp.bfloat16),
        b3=pad2(b3f, 1, out_p).astype(jnp.float32),
    )


# -----------------------------------------------------------------------------
# Wrapper: batch-tiled grid, weight-resident BlockSpecs.
# -----------------------------------------------------------------------------
@functools.partial(jax.jit, static_argnames=("num_out", "block_b"))
def moa_forward(x, fp, *, num_out, block_b=512):
    """x: [B, num_in] float32; fp: folded/padded params; returns [B, num_out] f32."""
    B, num_in = x.shape
    in_p = fp["w1"].shape[0]
    out_p = fp["w3"].shape[1]

    # Batch tile: largest multiple of 8 up to block_b; pad B up to a multiple.
    tb = min(block_b, _round_up(B, 8))
    b_p = _round_up(B, tb)

    x_p = jnp.pad(x, ((0, b_p - B), (0, in_p - num_in))).astype(jnp.bfloat16)

    weight_args = (fp["w1"], fp["b1"], fp["w2"], fp["b2"], fp["w3"], fp["b3"])
    weight_specs = [
        pl.BlockSpec(w.shape, lambda i: (0, 0)) for w in weight_args
    ]  # constant index_map -> VMEM-resident across all batch tiles

    out_padded = pl.pallas_call(
        moa_kernel,
        out_shape=jax.ShapeDtypeStruct((b_p, out_p), jnp.float32),
        grid=(b_p // tb,),
        in_specs=[pl.BlockSpec((tb, in_p), lambda i: (i, 0))] + weight_specs,
        out_specs=pl.BlockSpec((tb, out_p), lambda i: (i, 0)),
        compiler_params=pltpu.CompilerParams(
            dimension_semantics=("parallel",),
            vmem_limit_bytes=48 * 1024 * 1024,
        ),
    )(x_p, *weight_args)

    return out_padded[:B, :num_out]


# -----------------------------------------------------------------------------
# Synthetic parameters (PyTorch MoAModel shapes) and references.
# -----------------------------------------------------------------------------
def make_params(key, num_in, num_hidden, num_out):
    ks = jax.random.split(key, 12)

    def linear(kw, kb, fan_in, fan_out):
        bound = 1.0 / jnp.sqrt(fan_in)
        # nn.Linear stores weight as [out, in]; we keep the transposed [in, out].
        w = jax.random.uniform(kw, (fan_in, fan_out), jnp.float32, -bound, bound)
        b = jax.random.uniform(kb, (1, fan_out), jnp.float32, -bound, bound)
        return w, b

    def bn(kg, kb, km, kv, feat):
        g = 1.0 + 0.1 * jax.random.normal(kg, (1, feat), jnp.float32)
        b = 0.1 * jax.random.normal(kb, (1, feat), jnp.float32)
        m = 0.05 * jax.random.normal(km, (1, feat), jnp.float32)
        v = 0.5 + jax.random.uniform(kv, (1, feat), jnp.float32)
        return g, b, m, v

    w1, b1 = linear(ks[0], ks[1], num_in, num_hidden)
    w2, b2 = linear(ks[2], ks[3], num_hidden, num_hidden)
    w3, b3 = linear(ks[4], ks[5], num_hidden, num_out)

    bn0_g, bn0_b, bn0_m, bn0_v = bn(*jax.random.split(ks[6], 4), num_in)
    bn1_g, bn1_b, bn1_m, bn1_v = bn(*jax.random.split(ks[7], 4), num_hidden)
    bn2_g, bn2_b, bn2_m, bn2_v = bn(*jax.random.split(ks[8], 4), num_hidden)

    return dict(
        bn0_g=bn0_g, bn0_b=bn0_b, bn0_m=bn0_m, bn0_v=bn0_v,
        w1=w1, b1=b1,
        bn1_g=bn1_g, bn1_b=bn1_b, bn1_m=bn1_m, bn1_v=bn1_v,
        w2=w2, b2=b2,
        bn2_g=bn2_g, bn2_b=bn2_b, bn2_m=bn2_m, bn2_v=bn2_v,
        w3=w3, b3=b3,
    )


def _bn_ref(h, g, b, m, v):
    return (h - m) * lax.rsqrt(v + BN_EPS) * g + b


def moa_reference_f32(x, p):
    """Full-precision, un-folded eval-mode reference (PyTorch semantics)."""
    h = _bn_ref(x, p["bn0_g"], p["bn0_b"], p["bn0_m"], p["bn0_v"])
    h = jnp.maximum(_bn_ref(h @ p["w1"] + p["b1"],
                            p["bn1_g"], p["bn1_b"], p["bn1_m"], p["bn1_v"]), 0.0)
    h = jnp.maximum(_bn_ref(h @ p["w2"] + p["b2"],
                            p["bn2_g"], p["bn2_b"], p["bn2_m"], p["bn2_v"]), 0.0)
    return h @ p["w3"] + p["b3"]


def moa_reference_folded(x, fp, num_out):
    """Plain-JAX reference using the exact folded/padded bf16 parameters."""
    in_p = fp["w1"].shape[0]
    xp = jnp.pad(x, ((0, 0), (0, in_p - x.shape[1]))).astype(jnp.bfloat16)
    h = jnp.maximum(
        jnp.dot(xp, fp["w1"], preferred_element_type=jnp.float32) + fp["b1"], 0.0)
    h = jnp.maximum(
        jnp.dot(h.astype(jnp.bfloat16), fp["w2"],
                preferred_element_type=jnp.float32) + fp["b2"], 0.0)
    o = jnp.dot(h.astype(jnp.bfloat16), fp["w3"],
                preferred_element_type=jnp.float32) + fp["b3"]
    return o[:, :num_out]


if __name__ == "__main__":
    # Small shapes consistent with the module (real model: in~875, hidden=1024, out~206).
    # Ragged B / feature dims exercise the batch + lane padding paths.
    B, NUM_IN, NUM_HIDDEN, NUM_OUT = 12, 30, 64, 10

    key = jax.random.PRNGKey(0)
    kx, kp = jax.random.split(key)

    x = jax.random.normal(kx, (B, NUM_IN), jnp.float32)
    params = make_params(kp, NUM_IN, NUM_HIDDEN, NUM_OUT)
    folded = fold_and_pad_params(params)

    out = moa_forward(x, folded, num_out=NUM_OUT)
    out = jax.block_until_ready(out)
    assert out.shape == (B, NUM_OUT)

    # Tight check against the same folded-bf16 math in plain JAX.
    ref_folded = moa_reference_folded(x, folded, NUM_OUT)
    assert jnp.allclose(out, ref_folded, atol=2e-3, rtol=2e-3), \
        "mismatch vs folded bf16 reference"

    # Looser check against the full f32, un-folded eval-mode reference
    # (difference is only bf16 weight/activation quantization).
    ref_f32 = moa_reference_f32(x, params)
    assert jnp.allclose(out, ref_f32, atol=5e-2, rtol=5e-2), \
        "mismatch vs f32 eval-mode reference"

    # TODO(synk): training-mode BatchNorm (batch statistics) and Dropout RNG
    # are not implemented; eval-mode semantics are reproduced instead.
    print("KERNEL_OK")
</pallas_src>

<mosaic_0001>
module attributes {stable_mosaic.version = 11 : i64} {
  func.func @moa_kernel(%arg0: i32, %arg1: memref<16x128xbf16, #tpu.memory_space<vmem>>, %arg2: memref<128x128xbf16, #tpu.memory_space<vmem>>, %arg3: memref<1x128xf32, #tpu.memory_space<vmem>>, %arg4: memref<128x128xbf16, #tpu.memory_space<vmem>>, %arg5: memref<1x128xf32, #tpu.memory_space<vmem>>, %arg6: memref<128x128xbf16, #tpu.memory_space<vmem>>, %arg7: memref<1x128xf32, #tpu.memory_space<vmem>>, %arg8: memref<16x128xf32, #tpu.memory_space<vmem>>) attributes {dimension_semantics = [#tpu.dimension_semantics<parallel>], iteration_bounds = array<i64: 1>, scalar_prefetch = 0 : i64, scratch_operands = 0 : i64, tpu.core_type = #tpu.core_type<tc>, window_params = [{transform_indices = @transform_0, window_bounds = array<i64: 16, 128>}, {pipeline_mode = #tpu.pipeline_mode<synchronous>, transform_indices = @transform_1, window_bounds = array<i64: 128, 128>}, {pipeline_mode = #tpu.pipeline_mode<synchronous>, transform_indices = @transform_2, window_bounds = array<i64: 1, 128>}, {pipeline_mode = #tpu.pipeline_mode<synchronous>, transform_indices = @transform_3, window_bounds = array<i64: 128, 128>}, {pipeline_mode = #tpu.pipeline_mode<synchronous>, transform_indices = @transform_4, window_bounds = array<i64: 1, 128>}, {pipeline_mode = #tpu.pipeline_mode<synchronous>, transform_indices = @transform_5, window_bounds = array<i64: 128, 128>}, {pipeline_mode = #tpu.pipeline_mode<synchronous>, transform_indices = @transform_6, window_bounds = array<i64: 1, 128>}, {transform_indices = @transform_7, window_bounds = array<i64: 16, 128>}]} {
    %c0 = arith.constant 0 : index
    %c0_0 = arith.constant 0 : index
    %0 = vector.load %arg1[%c0, %c0_0] : memref<16x128xbf16, #tpu.memory_space<vmem>>, vector<16x128xbf16>
    %c0_1 = arith.constant 0 : index
    %c0_2 = arith.constant 0 : index
    %1 = vector.load %arg2[%c0_1, %c0_2] : memref<128x128xbf16, #tpu.memory_space<vmem>>, vector<128x128xbf16>
    %cst = arith.constant dense<0.000000e+00> : vector<16x128xf32>
    %2 = tpu.matmul %0, %1, %cst {dimension_numbers = #tpu.dot_dimension_numbers<[1], [0], [0], [1], [0, 0, 1, 1], [], []>} : vector<16x128xbf16>, vector<128x128xbf16>, vector<16x128xf32> -> vector<16x128xf32>
    %c0_3 = arith.constant 0 : index
    %c0_4 = arith.constant 0 : index
    %3 = vector.load %arg3[%c0_3, %c0_4] : memref<1x128xf32, #tpu.memory_space<vmem>>, vector<1x128xf32>
    %4 = vector.broadcast %3 : vector<1x128xf32> to vector<16x128xf32>
    %5 = arith.addf %2, %4 : vector<16x128xf32>
    %cst_5 = arith.constant 0.000000e+00 : f32
    %6 = vector.broadcast %cst_5 : f32 to vector<16x128xf32>
    %7 = arith.maximumf %5, %6 : vector<16x128xf32>
    %8 = arith.truncf %7 : vector<16x128xf32> to vector<16x128xbf16>
    %c0_6 = arith.constant 0 : index
    %c0_7 = arith.constant 0 : index
    %9 = vector.load %arg4[%c0_6, %c0_7] : memref<128x128xbf16, #tpu.memory_space<vmem>>, vector<128x128xbf16>
    %cst_8 = arith.constant dense<0.000000e+00> : vector<16x128xf32>
    %10 = tpu.matmul %8, %9, %cst_8 {dimension_numbers = #tpu.dot_dimension_numbers<[1], [0], [0], [1], [0, 0, 1, 1], [], []>} : vector<16x128xbf16>, vector<128x128xbf16>, vector<16x128xf32> -> vector<16x128xf32>
    %c0_9 = arith.constant 0 : index
    %c0_10 = arith.constant 0 : index
    %11 = vector.load %arg5[%c0_9, %c0_10] : memref<1x128xf32, #tpu.memory_space<vmem>>, vector<1x128xf32>
    %12 = vector.broadcast %11 : vector<1x128xf32> to vector<16x128xf32>
    %13 = arith.addf %10, %12 : vector<16x128xf32>
    %cst_11 = arith.constant 0.000000e+00 : f32
    %14 = vector.broadcast %cst_11 : f32 to vector<16x128xf32>
    %15 = arith.maximumf %13, %14 : vector<16x128xf32>
    %16 = arith.truncf %15 : vector<16x128xf32> to vector<16x128xbf16>
    %c0_12 = arith.constant 0 : index
    %c0_13 = arith.constant 0 : index
    %17 = vector.load %arg6[%c0_12, %c0_13] : memref<128x128xbf16, #tpu.memory_space<vmem>>, vector<128x128xbf16>
    %cst_14 = arith.constant dense<0.000000e+00> : vector<16x128xf32>
    %18 = tpu.matmul %16, %17, %cst_14 {dimension_numbers = #tpu.dot_dimension_numbers<[1], [0], [0], [1], [0, 0, 1, 1], [], []>} : vector<16x128xbf16>, vector<128x128xbf16>, vector<16x128xf32> -> vector<16x128xf32>
    %c0_15 = arith.constant 0 : index
    %c0_16 = arith.constant 0 : index
    %19 = vector.load %arg7[%c0_15, %c0_16] : memref<1x128xf32, #tpu.memory_space<vmem>>, vector<1x128xf32>
    %20 = vector.broadcast %19 : vector<1x128xf32> to vector<16x128xf32>
    %21 = arith.addf %18, %20 : vector<16x128xf32>
    %c0_17 = arith.constant 0 : index
    %c0_18 = arith.constant 0 : index
    %22 = vector.load %arg8[%c0_17, %c0_18] : memref<16x128xf32, #tpu.memory_space<vmem>>, vector<16x128xf32>
    tpu.vector_store %arg8[%c0_17, %c0_18], %21 {strides = array<i32>} : memref<16x128xf32, #tpu.memory_space<vmem>>, vector<16x128xf32>,
    return
  }
  func.func @transform_0(%arg0: i32) -> (i32, i32) {
    %c0_i32 = arith.constant 0 : i32
    %c0_i32_0 = arith.constant 0 : i32
    return %arg0, %c0_i32 : i32, i32
  }
  func.func @transform_1(%arg0: i32) -> (i32, i32) {
    %c0_i32 = arith.constant 0 : i32
    %c0_i32_0 = arith.constant 0 : i32
    %c0_i32_1 = arith.constant 0 : i32
    return %c0_i32, %c0_i32_0 : i32, i32
  }
  func.func @transform_2(%arg0: i32) -> (i32, i32) {
    %c0_i32 = arith.constant 0 : i32
    %c0_i32_0 = arith.constant 0 : i32
    %c0_i32_1 = arith.constant 0 : i32
    return %c0_i32, %c0_i32_0 : i32, i32
  }
  func.func @transform_3(%arg0: i32) -> (i32, i32) {
    %c0_i32 = arith.constant 0 : i32
    %c0_i32_0 = arith.constant 0 : i32
    %c0_i32_1 = arith.constant 0 : i32
    return %c0_i32, %c0_i32_0 : i32, i32
  }
  func.func @transform_4(%arg0: i32) -> (i32, i32) {
    %c0_i32 = arith.constant 0 : i32
    %c0_i32_0 = arith.constant 0 : i32
    %c0_i32_1 = arith.constant 0 : i32
    return %c0_i32, %c0_i32_0 : i32, i32
  }
  func.func @transform_5(%arg0: i32) -> (i32, i32) {
    %c0_i32 = arith.constant 0 : i32
    %c0_i32_0 = arith.constant 0 : i32
    %c0_i32_1 = arith.constant 0 : i32
    return %c0_i32, %c0_i32_0 : i32, i32
  }
  func.func @transform_6(%arg0: i32) -> (i32, i32) {
    %c0_i32 = arith.constant 0 : i32
    %c0_i32_0 = arith.constant 0 : i32
    %c0_i32_1 = arith.constant 0 : i32
    return %c0_i32, %c0_i32_0 : i32, i32
  }
  func.func @transform_7(%arg0: i32) -> (i32, i32) {
    %c0_i32 = arith.constant 0 : i32
    %c0_i32_0 = arith.constant 0 : i32
    return %arg0, %c0_i32 : i32, i32
  }
}

</mosaic_0001>

<llo_original>
// kernel: moa_forward.1
$region0: #{moa_forward.1}
  #allocation0 [shape = 'u32[]', space=smem, size = 0x4, offset = 0x4, fixed_abs, tag = 'smem constant byte address 0x4 - core index']
  #allocation1 [shape = 'u32[144,128]{1,0:T(1,128)}', space=vmem, size = 0x12000, scoped, tag = 'internal scratch']
  %s0 = inlined_call_operand.vmem [shape: bf16[16,128], index: 0, kind: input, shape index: {}]
  %s1 = inlined_call_operand.hbm [shape: bf16[128,128], index: 1, kind: input, shape index: {}]
  %s2 = inlined_call_operand.vmem [shape: f32[1,128], index: 2, kind: input, shape index: {}]
  %s3 = inlined_call_operand.hbm [shape: bf16[128,128], index: 3, kind: input, shape index: {}]
  %s4 = inlined_call_operand.vmem [shape: f32[1,128], index: 4, kind: input, shape index: {}]
  %s5 = inlined_call_operand.hbm [shape: bf16[128,128], index: 5, kind: input, shape index: {}]
  %s6 = inlined_call_operand.vmem [shape: f32[1,128], index: 6, kind: input, shape index: {}]
  %s7 = inlined_call_operand.hbm [shape: f32[16,128], index: 7, kind: output, shape index: {}]
  %s8 = sld [smem:[#allocation0]]
  $region50: #{moa_forward.1} parent=0
    _
  %s10 = ssub.s32 1, %s8
  %s11 = scalar_select 0, %s10, %s8
  $region1: #{moa_forward.1} parent=0
    #allocation2 [shape = 'u8[32768]{0}', space=vmem, size = 0x8000, scoped, tag = 'input window, operand 1, single buffered']
    #allocation3 [shape = 's32[1]{0}', space=sflag, size = 0x4, scoped, tag = 'scoped memory for moa_forward.1']
    #allocation4 [shape = 's32[1]{0}', space=sflag, size = 0x4, scoped, tag = 'scoped memory for moa_forward.1']
    #allocation5 [shape = 'u8[32768]{0}', space=vmem, size = 0x8000, scoped, tag = 'input window, operand 3, single buffered']
    #allocation6 [shape = 's32[1]{0}', space=sflag, size = 0x4, scoped, tag = 'scoped memory for moa_forward.1']
    #allocation7 [shape = 'u8[32768]{0}', space=vmem, size = 0x8000, scoped, tag = 'input window, operand 5, single buffered']
    #allocation8 [shape = 'u8[8192]{0}', space=vmem, size = 0x2000, scoped, tag = 'output window, operand 0, single buffered']
    %12 = vsyncpa [#allocation3], 0
    %13 = vsyncpa [#allocation6], 0
    %14 = vsyncpa [#allocation4], 0
    // Predicated region
    $region2: #{moa_forward.1} parent=1 // pred_check
      _
    $region3: #{moa_forward.1} parent=1 // pred_check_branch
      %16 = sbr.rel (0) target = $region5
    $region4: #{moa_forward.1} parent=1 // pred_region
      _
    $region5: #{moa_forward.1} parent=1 // pred_fallthru
      _
    // Predicated region
    $region6: #{moa_forward.1} parent=1 // pred_check
      _
    $region7: #{moa_forward.1} parent=1 // pred_check_branch
      %18 = sbr.rel (0) target = $region9
    $region8: #{moa_forward.1} parent=1 // pred_region
      %s20 = ssub.s32 1024, 1024
      %21 = vsyncadd [#allocation3], %s20
      %s22 = sshll.u32 [#allocation2], 4
      %s23 = int_to_ptr.vmem [resolvable:$true] %s22
      %28 = dma.hbm_to_vmem [thread:$0]  %s1, 1024, %s23, [#allocation3], 64, 64, 4
    $region9: #{moa_forward.1} parent=1 // pred_fallthru
      _
    // Predicated region
    $region10: #{moa_forward.1} parent=1 // pred_check
      _
    $region11: #{moa_forward.1} parent=1 // pred_check_branch
      %30 = sbr.rel (0) target = $region13
    $region12: #{moa_forward.1} parent=1 // pred_region
      _
    $region13: #{moa_forward.1} parent=1 // pred_fallthru
      _
    // Predicated region
    $region14: #{moa_forward.1} parent=1 // pred_check
      _
    $region15: #{moa_forward.1} parent=1 // pred_check_branch
      %32 = sbr.rel (0) target = $region17
    $region16: #{moa_forward.1} parent=1 // pred_region
      %s34 = ssub.s32 1024, 1024
      %35 = vsyncadd [#allocation6], %s34
      %s36 = sshll.u32 [#allocation5], 4
      %s37 = int_to_ptr.vmem [resolvable:$true] %s36
      %42 = dma.hbm_to_vmem [thread:$0]  %s3, 1024, %s37, [#allocation6], 64, 64, 4
    $region17: #{moa_forward.1} parent=1 // pred_fallthru
      _
    // Predicated region
    $region18: #{moa_forward.1} parent=1 // pred_check
      _
    $region19: #{moa_forward.1} parent=1 // pred_check_branch
      %44 = sbr.rel (0) target = $region21
    $region20: #{moa_forward.1} parent=1 // pred_region
      _
    $region21: #{moa_forward.1} parent=1 // pred_fallthru
      _
    // Predicated region
    $region22: #{moa_forward.1} parent=1 // pred_check
      _
    $region23: #{moa_forward.1} parent=1 // pred_check_branch
      %46 = sbr.rel (0) target = $region25
    $region24: #{moa_forward.1} parent=1 // pred_region
      %s48 = ssub.s32 1024, 1024
      %49 = vsyncadd [#allocation6], %s48
      %s50 = sshll.u32 [#allocation7], 4
      %s51 = int_to_ptr.vmem [resolvable:$true] %s50
      %56 = dma.hbm_to_vmem [thread:$0]  %s5, 1024, %s51, [#allocation6], 64, 64, 4
    $region25: #{moa_forward.1} parent=1 // pred_fallthru
      _
    // Predicated region
    $region26: #{moa_forward.1} parent=1 // pred_check
      _
    $region27: #{moa_forward.1} parent=1 // pred_check_branch
      %58 = sbr.rel (0) target = $region29
    $region28: #{moa_forward.1} parent=1 // pred_region
      _
    $region29: #{moa_forward.1} parent=1 // pred_fallthru
      _
    // Predicated region
    $region30: #{moa_forward.1} parent=1 // pred_check
      _
    $region31: #{moa_forward.1} parent=1 // pred_check_branch
      %60 = sbr.rel (0) target = $region33
    $region32: #{moa_forward.1} parent=1 // pred_region
      %61 = dma.done [#allocation3], 1024
    $region33: #{moa_forward.1} parent=1 // pred_fallthru
      _
    // Predicated region
    $region34: #{moa_forward.1} parent=1 // pred_check
      _
    $region35: #{moa_forward.1} parent=1 // pred_check_branch
      %63 = sbr.rel (0) target = $region37
    $region36: #{moa_forward.1} parent=1 // pred_region
      %64 = dma.done [#allocation6], 1024
    $region37: #{moa_forward.1} parent=1 // pred_fallthru
      _
    // Predicated region
    $region38: #{moa_forward.1} parent=1 // pred_check
      _
    $region39: #{moa_forward.1} parent=1 // pred_check_branch
      %66 = sbr.rel (0) target = $region41
    $region40: #{moa_forward.1} parent=1 // pred_region
      %67 = dma.done [#allocation6], 1024
    $region41: #{moa_forward.1} parent=1 // pred_fallthru
      _
    %v69 = vld [vmem:[%s0] sm:$0xf]
    %v70 = vld [vmem:[%s0 + $0x4] sm:$0xf]
    %v71 = vld [vmem:[#allocation2] sm:$0xf]
    %v72 = vld [vmem:[#allocation2 + $0x4] sm:$0xf]
    %v73 = vld [vmem:[#allocation2 + $0x8] sm:$0xf]
    %v74 = vld [vmem:[#allocation2 + $0xc] sm:$0xf]
    %v75 = vld [vmem:[#allocation2 + $0x10] sm:$0xf]
    %v76 = vld [vmem:[#allocation2 + $0x14] sm:$0xf]
    %v77 = vld [vmem:[#allocation2 + $0x18] sm:$0xf]
    %v78 = vld [vmem:[#allocation2 + $0x1c] sm:$0xf]
    %v79 = vld [vmem:[#allocation2 + $0x20] sm:$0xf]
    %v80 = vld [vmem:[#allocation2 + $0x24] sm:$0xf]
    %v81 = vld [vmem:[#allocation2 + $0x28] sm:$0xf]
    %v82 = vld [vmem:[#allocation2 + $0x2c] sm:$0xf]
    %v83 = vld [vmem:[#allocation2 + $0x30] sm:$0xf]
    %v84 = vld [vmem:[#allocation2 + $0x34] sm:$0xf]
    %v85 = vld [vmem:[#allocation2 + $0x38] sm:$0xf]
    %v86 = vld [vmem:[#allocation2 + $0x3c] sm:$0xf]
    %v87 = vld [vmem:[%s2] sm:$0x1]
    %v89 = vlaneseq
    %v90 = vshrl.u32 %v89, 7
    %v91 = vsub.s32 0, %v90
    %v92 = vrot.slane %v87, %v91
    %v96 = vunpack.c.l.b16 %v69
    %v97 = vunpack.c.l.b16 %v70
    %v98 = vpack.c.b16 %v97, %v96
    %v116 = vunpack.c.l.b16 %v71
    %v117 = vunpack.c.l.b16 %v72
    %v118 = vunpack.c.l.b16 %v73
    %v119 = vunpack.c.l.b16 %v74
    %v120 = vunpack.c.l.b16 %v75
    %v121 = vunpack.c.l.b16 %v76
    %v122 = vunpack.c.l.b16 %v77
    %v123 = vunpack.c.l.b16 %v78
    %v124 = vunpack.c.l.b16 %v79
    %v125 = vunpack.c.l.b16 %v80
    %v126 = vunpack.c.l.b16 %v81
    %v127 = vunpack.c.l.b16 %v82
    %v128 = vunpack.c.l.b16 %v83
    %v129 = vunpack.c.l.b16 %v84
    %v130 = vunpack.c.l.b16 %v85
    %v131 = vunpack.c.l.b16 %v86
    %v132 = vpack.c.b16 %v117, %v116
    %v133 = vpack.c.b16 %v119, %v118
    %v134 = vpack.c.b16 %v121, %v120
    %v135 = vpack.c.b16 %v123, %v122
    %v136 = vpack.c.b16 %v125, %v124
    %v137 = vpack.c.b16 %v127, %v126
    %v138 = vpack.c.b16 %v129, %v128
    %v139 = vpack.c.b16 %v131, %v130
    %148 = vmatprep.subr.bf16.mxu0 0
    %149 = vmatpush1.bf16.msra.mxu0 %v139
    %150 = vmatprep.subr.bf16.mxu0 0
    %151 = vmatpush1.bf16.msra.mxu0 %v138
    %152 = vmatprep.subr.bf16.mxu0 0
    %153 = vmatpush1.bf16.msra.mxu0 %v137
    %154 = vmatprep.subr.bf16.mxu0 0
    %155 = vmatpush1.bf16.msra.mxu0 %v136
    %156 = vmatprep.subr.bf16.mxu0 0
    %157 = vmatpush1.bf16.msra.mxu0 %v135
    %158 = vmatprep.subr.bf16.mxu0 0
    %159 = vmatpush1.bf16.msra.mxu0 %v134
    %160 = vmatprep.subr.bf16.mxu0 0
    %161 = vmatpush1.bf16.msra.mxu0 %v133
    %162 = vmatprep.subr.bf16.mxu0 0
    %163 = vmatpush1.bf16.msra.mxu0 %v132
    %164 = vmatprep.subr.bf16.mxu0 0
    %165 = vmatpush2.bf16.msra.mxu0 0
    %166 = vmatprep.subr.bf16.mxu0 0
    %167 = vmatpush2.bf16.msra.mxu0 0
    %168 = vmatprep.subr.bf16.mxu0 0
    %169 = vmatpush2.bf16.msra.mxu0 0
    %170 = vmatprep.subr.bf16.mxu0 0
    %171 = vmatpush2.bf16.msra.mxu0 0
    %172 = vmatprep.subr.bf16.mxu0 0
    %173 = vmatpush2.bf16.msra.mxu0 0
    %174 = vmatprep.subr.bf16.mxu0 0
    %175 = vmatpush2.bf16.msra.mxu0 0
    %176 = vmatprep.subr.bf16.mxu0 0
    %177 = vmatpush2.bf16.msra.mxu0 0
    %178 = vmatprep.subr.bf16.mxu0 0
    %179 = vmatpush2.bf16.msra.mxu0 0
    %180 = vmatprep.mubr.bf16.mxu0 0
    %181 = vmatmul.mubr.bf16.gmra.mxu0 %v98
    %v182 = vpop.f32.mrf.mxu0
    %v183 = vadd.f32 %v92, %v182
    %v184 = vpop.f32.mrf.mxu0
    %v185 = vpop.f32.mrf.mxu0
    %v186 = vadd.f32 %v92, %v185
    %v187 = vpop.f32.mrf.mxu0
    %188 = vdwg.mxu0
    %v189 = vmax.f32 %v183, 0.0
    %v190 = vmax.f32 %v186, 0.0
    %v191 = vpack.c.bf16 %v190, %v189
    %v192 = vld [vmem:[#allocation5] sm:$0xf]
    %v193 = vld [vmem:[#allocation5 + $0x4] sm:$0xf]
    %v194 = vld [vmem:[#allocation5 + $0x8] sm:$0xf]
    %v195 = vld [vmem:[#allocation5 + $0xc] sm:$0xf]
    %v196 = vld [vmem:[#allocation5 + $0x10] sm:$0xf]
    %v197 = vld [vmem:[#allocation5 + $0x14] sm:$0xf]
    %v198 = vld [vmem:[#allocation5 + $0x18] sm:$0xf]
    %v199 = vld [vmem:[#allocation5 + $0x1c] sm:$0xf]
    %v200 = vld [vmem:[#allocation5 + $0x20] sm:$0xf]
    %v201 = vld [vmem:[#allocation5 + $0x24] sm:$0xf]
    %v202 = vld [vmem:[#allocation5 + $0x28] sm:$0xf]
    %v203 = vld [vmem:[#allocation5 + $0x2c] sm:$0xf]
    %v204 = vld [vmem:[#allocation5 + $0x30] sm:$0xf]
    %v205 = vld [vmem:[#allocation5 + $0x34] sm:$0xf]
    %v206 = vld [vmem:[#allocation5 + $0x38] sm:$0xf]
    %v207 = vld [vmem:[#allocation5 + $0x3c] sm:$0xf]
    %v208 = vld [vmem:[%s4] sm:$0x1]
    %v210 = vlaneseq
    %v211 = vshrl.u32 %v210, 7
    %v212 = vsub.s32 0, %v211
    %v213 = vrot.slane %v208, %v212
    %v231 = vunpack.c.l.b16 %v192
    %v232 = vunpack.c.l.b16 %v193
    %v233 = vunpack.c.l.b16 %v194
    %v234 = vunpack.c.l.b16 %v195
    %v235 = vunpack.c.l.b16 %v196
    %v236 = vunpack.c.l.b16 %v197
    %v237 = vunpack.c.l.b16 %v198
    %v238 = vunpack.c.l.b16 %v199
    %v239 = vunpack.c.l.b16 %v200
    %v240 = vunpack.c.l.b16 %v201
    %v241 = vunpack.c.l.b16 %v202
    %v242 = vunpack.c.l.b16 %v203
    %v243 = vunpack.c.l.b16 %v204
    %v244 = vunpack.c.l.b16 %v205
    %v245 = vunpack.c.l.b16 %v206
    %v246 = vunpack.c.l.b16 %v207
    %v247 = vpack.c.b16 %v232, %v231
    %v248 = vpack.c.b16 %v234, %v233
    %v249 = vpack.c.b16 %v236, %v235
    %v250 = vpack.c.b16 %v238, %v237
    %v251 = vpack.c.b16 %v240, %v239
    %v252 = vpack.c.b16 %v242, %v241
    %v253 = vpack.c.b16 %v244, %v243
    %v254 = vpack.c.b16 %v246, %v245
    %263 = vmatprep.subr.bf16.mxu0 0
    %264 = vmatpush1.bf16.msra.mxu0 %v254
    %265 = vmatprep.subr.bf16.mxu0 0
    %266 = vmatpush1.bf16.msra.mxu0 %v253
    %267 = vmatprep.subr.bf16.mxu0 0
    %268 = vmatpush1.bf16.msra.mxu0 %v252
    %269 = vmatprep.subr.bf16.mxu0 0
    %270 = vmatpush1.bf16.msra.mxu0 %v251
    %271 = vmatprep.subr.bf16.mxu0 0
    %272 = vmatpush1.bf16.msra.mxu0 %v250
    %273 = vmatprep.subr.bf16.mxu0 0
    %274 = vmatpush1.bf16.msra.mxu0 %v249
    %275 = vmatprep.subr.bf16.mxu0 0
    %276 = vmatpush1.bf16.msra.mxu0 %v248
    %277 = vmatprep.subr.bf16.mxu0 0
    %278 = vmatpush1.bf16.msra.mxu0 %v247
    %279 = vmatprep.subr.bf16.mxu0 0
    %280 = vmatpush2.bf16.msra.mxu0 0
    %281 = vmatprep.subr.bf16.mxu0 0
    %282 = vmatpush2.bf16.msra.mxu0 0
    %283 = vmatprep.subr.bf16.mxu0 0
    %284 = vmatpush2.bf16.msra.mxu0 0
    %285 = vmatprep.subr.bf16.mxu0 0
    %286 = vmatpush2.bf16.msra.mxu0 0
    %287 = vmatprep.subr.bf16.mxu0 0
    %288 = vmatpush2.bf16.msra.mxu0 0
    %289 = vmatprep.subr.bf16.mxu0 0
    %290 = vmatpush2.bf16.msra.mxu0 0
    %291 = vmatprep.subr.bf16.mxu0 0
    %292 = vmatpush2.bf16.msra.mxu0 0
    %293 = vmatprep.subr.bf16.mxu0 0
    %294 = vmatpush2.bf16.msra.mxu0 0
    %295 = vmatprep.mubr.bf16.mxu0 0
    %296 = vmatmul.mubr.bf16.gmra.mxu0 %v191
    %v297 = vpop.f32.mrf.mxu0
    %v298 = vadd.f32 %v213, %v297
    %v299 = vpop.f32.mrf.mxu0
    %v300 = vpop.f32.mrf.mxu0
    %v301 = vadd.f32 %v213, %v300
    %v302 = vpop.f32.mrf.mxu0
    %303 = vdwg.mxu0
    %v304 = vmax.f32 %v298, 0.0
    %v305 = vmax.f32 %v301, 0.0
    %v306 = vpack.c.bf16 %v305, %v304
    %v307 = vld [vmem:[#allocation7] sm:$0xf]
    %v308 = vld [vmem:[#allocation7 + $0x4] sm:$0xf]
    %v309 = vld [vmem:[#allocation7 + $0x8] sm:$0xf]
    %v310 = vld [vmem:[#allocation7 + $0xc] sm:$0xf]
    %v311 = vld [vmem:[#allocation7 + $0x10] sm:$0xf]
    %v312 = vld [vmem:[#allocation7 + $0x14] sm:$0xf]
    %v313 = vld [vmem:[#allocation7 + $0x18] sm:$0xf]
    %v314 = vld [vmem:[#allocation7 + $0x1c] sm:$0xf]
    %v315 = vld [vmem:[#allocation7 + $0x20] sm:$0xf]
    %v316 = vld [vmem:[#allocation7 + $0x24] sm:$0xf]
    %v317 = vld [vmem:[#allocation7 + $0x28] sm:$0xf]
    %v318 = vld [vmem:[#allocation7 + $0x2c] sm:$0xf]
    %v319 = vld [vmem:[#allocation7 + $0x30] sm:$0xf]
    %v320 = vld [vmem:[#allocation7 + $0x34] sm:$0xf]
    %v321 = vld [vmem:[#allocation7 + $0x38] sm:$0xf]
    %v322 = vld [vmem:[#allocation7 + $0x3c] sm:$0xf]
    %v323 = vld [vmem:[%s6] sm:$0x1]
    %v325 = vlaneseq
    %v326 = vshrl.u32 %v325, 7
    %v327 = vsub.s32 0, %v326
    %v328 = vrot.slane %v323, %v327
    %v346 = vunpack.c.l.b16 %v307
    %v347 = vunpack.c.l.b16 %v308
    %v348 = vunpack.c.l.b16 %v309
    %v349 = vunpack.c.l.b16 %v310
    %v350 = vunpack.c.l.b16 %v311
    %v351 = vunpack.c.l.b16 %v312
    %v352 = vunpack.c.l.b16 %v313
    %v353 = vunpack.c.l.b16 %v314
    %v354 = vunpack.c.l.b16 %v315
    %v355 = vunpack.c.l.b16 %v316
    %v356 = vunpack.c.l.b16 %v317
    %v357 = vunpack.c.l.b16 %v318
    %v358 = vunpack.c.l.b16 %v319
    %v359 = vunpack.c.l.b16 %v320
    %v360 = vunpack.c.l.b16 %v321
    %v361 = vunpack.c.l.b16 %v322
    %v362 = vpack.c.b16 %v347, %v346
    %v363 = vpack.c.b16 %v349, %v348
    %v364 = vpack.c.b16 %v351, %v350
    %v365 = vpack.c.b16 %v353, %v352
    %v366 = vpack.c.b16 %v355, %v354
    %v367 = vpack.c.b16 %v357, %v356
    %v368 = vpack.c.b16 %v359, %v358
    %v369 = vpack.c.b16 %v361, %v360
    %378 = vmatprep.subr.bf16.mxu0 0
    %379 = vmatpush1.bf16.msra.mxu0 %v369
    %380 = vmatprep.subr.bf16.mxu0 0
    %381 = vmatpush1.bf16.msra.mxu0 %v368
    %382 = vmatprep.subr.bf16.mxu0 0
    %383 = vmatpush1.bf16.msra.mxu0 %v367
    %384 = vmatprep.subr.bf16.mxu0 0
    %385 = vmatpush1.bf16.msra.mxu0 %v366
    %386 = vmatprep.subr.bf16.mxu0 0
    %387 = vmatpush1.bf16.msra.mxu0 %v365
    %388 = vmatprep.subr.bf16.mxu0 0
    %389 = vmatpush1.bf16.msra.mxu0 %v364
    %390 = vmatprep.subr.bf16.mxu0 0
    %391 = vmatpush1.bf16.msra.mxu0 %v363
    %392 = vmatprep.subr.bf16.mxu0 0
    %393 = vmatpush1.bf16.msra.mxu0 %v362
    %394 = vmatprep.subr.bf16.mxu0 0
    %395 = vmatpush2.bf16.msra.mxu0 0
    %396 = vmatprep.subr.bf16.mxu0 0
    %397 = vmatpush2.bf16.msra.mxu0 0
    %398 = vmatprep.subr.bf16.mxu0 0
    %399 = vmatpush2.bf16.msra.mxu0 0
    %400 = vmatprep.subr.bf16.mxu0 0
    %401 = vmatpush2.bf16.msra.mxu0 0
    %402 = vmatprep.subr.bf16.mxu0 0
    %403 = vmatpush2.bf16.msra.mxu0 0
    %404 = vmatprep.subr.bf16.mxu0 0
    %405 = vmatpush2.bf16.msra.mxu0 0
    %406 = vmatprep.subr.bf16.mxu0 0
    %407 = vmatpush2.bf16.msra.mxu0 0
    %408 = vmatprep.subr.bf16.mxu0 0
    %409 = vmatpush2.bf16.msra.mxu0 0
    %410 = vmatprep.mubr.bf16.mxu0 0
    %411 = vmatmul.mubr.bf16.gmra.mxu0 %v306
    %v412 = vpop.f32.mrf.mxu0
    %v413 = vadd.f32 %v328, %v412
    %v414 = vpop.f32.mrf.mxu0
    %v415 = vpop.f32.mrf.mxu0
    %v416 = vadd.f32 %v328, %v415
    %v417 = vpop.f32.mrf.mxu0
    %418 = vdwg.mxu0
    %419 = vst [vmem:[#allocation8] sm:$0xff] %v413
    %420 = vst [vmem:[#allocation8 + $0x8] sm:$0xff] %v416
    // Predicated region
    $region42: #{moa_forward.1} parent=1 // pred_check
      _
    $region43: #{moa_forward.1} parent=1 // pred_check_branch
      %422 = sbr.rel (0) target = $region45
    $region44: #{moa_forward.1} parent=1 // pred_region
      %s424 = ssub.s32 256, 256
      %425 = vsyncadd [#allocation4], %s424
      %s426 = sshll.u32 [#allocation8], 4
      %s427 = int_to_ptr.vmem [resolvable:$true] %s426
      %432 = dma.vmem_to_hbm [thread:$0]  %s427, 256, %s7, [#allocation4], 128, 128, 8
    $region45: #{moa_forward.1} parent=1 // pred_fallthru
      _
    // Predicated region
    $region46: #{moa_forward.1} parent=1 // pred_check
      _
    $region47: #{moa_forward.1} parent=1 // pred_check_branch
      %434 = sbr.rel (0) target = $region49
    $region48: #{moa_forward.1} parent=1 // pred_region
      %435 = dma.done [#allocation4], 256
    $region49: #{moa_forward.1} parent=1 // pred_fallthru
      _
    %436 = vsyncpa [#allocation3], 1
    %437 = vsyncpa [#allocation6], 1
    %438 = vsyncpa [#allocation4], 1

</llo_original>
